<compile_context>
chip_gen: v5e
topology: v5e:2x2
jax: 0.10.0
libtpu: 0.0.40
codegen_flags: <defaults>
</compile_context>

<pallas_src>
import jax
import jax.numpy as jnp
from jax.experimental import pallas as pl
from jax.experimental.pallas import tpu as pltpu


def mlp_tanh_kernel(x_ref, w1_ref, w2_ref, o_ref):
    # z  = X @ W1        (MXU, f32 accumulate)
    # z2 = tanh(z)       (EUP, f32)
    # z3 = z2 @ W2       (MXU, f32 accumulate)
    # out = tanh(z3)     (EUP, f32)
    z = jnp.dot(x_ref[...], w1_ref[...], preferred_element_type=jnp.float32)
    z2 = jnp.tanh(z)
    z3 = jnp.dot(z2, w2_ref[...], preferred_element_type=jnp.float32)
    o_ref[...] = jnp.tanh(z3).astype(o_ref.dtype)


def neural_network_forward(x, w1, w2, *, block_batch=8192,
                           min_pallas_batch=512, force_pallas=False):
    batch, input_size = x.shape
    hidden = w1.shape[1]
    out_size = w2.shape[1]
    itemsize = jnp.dtype(x.dtype).itemsize

    # Tiny-batch fast path: a single pallas_call step costs ~1 us of fixed overhead,
    # which dwarfs the math for a 16->32->2 MLP at small batch.
    if batch < min_pallas_batch and not force_pallas:
        return jnp.tanh(jnp.tanh(x @ w1) @ w2)

    # --- batch tile choice ---------------------------------------------------
    # n_tiles from the requested block size, but keep >= 2 grid steps whenever the
    # batch is big enough so the "parallel" axis actually feeds both v7x TCs.
    n_tiles = max(pl.cdiv(batch, block_batch), 1)
    if batch >= 16:
        n_tiles = max(n_tiles, 2)
    tm = pl.cdiv(batch, n_tiles)
    if tm < batch:
        tm = pl.cdiv(tm, 8) * 8        # sublane alignment for partial-batch blocks
    padded_batch = pl.cdiv(batch, tm) * tm
    grid = (padded_batch // tm,)

    # Pad only the (small) tail: at most tm-1 extra rows, none when batch % tm == 0.
    if padded_batch != batch:
        x_in = jnp.pad(x, ((0, padded_batch - batch), (0, 0)))
    else:
        x_in = x

    cost = pl.CostEstimate(
        flops=2 * padded_batch * (input_size * hidden + hidden * out_size),
        transcendentals=padded_batch * (hidden + out_size),
        bytes_accessed=(
            padded_batch * input_size        # X read
            + input_size * hidden            # W1 read (resident, DMA'd once)
            + hidden * out_size              # W2 read (resident, DMA'd once)
            + padded_batch * out_size        # output write (unpadded, 2 cols)
        ) * itemsize,
    )

    out = pl.pallas_call(
        mlp_tanh_kernel,
        out_shape=jax.ShapeDtypeStruct((padded_batch, out_size), x.dtype),
        grid_spec=pl.GridSpec(
            grid=grid,
            in_specs=[
                # X: one batch tile per grid step
                pl.BlockSpec((tm, input_size), lambda i: (i, 0)),
                # W1, W2: same block every step -> held resident in VMEM
                pl.BlockSpec((input_size, hidden), lambda i: (0, 0)),
                pl.BlockSpec((hidden, out_size), lambda i: (0, 0)),
            ],
            # last dim == full array dim (2), so the (8,128) rule is satisfied
            out_specs=pl.BlockSpec((tm, out_size), lambda i: (i, 0)),
        ),
        compiler_params=pltpu.CompilerParams(
            dimension_semantics=("parallel",),   # batch loop sharded across TCs
            vmem_limit_bytes=32 << 20,           # safe on v7x's 64 MiB physical VMEM
        ),
        cost_estimate=cost,
    )(x_in, w1, w2)

    return out[:batch] if padded_batch != batch else out


if __name__ == "__main__":
    # Shapes consistent with the module: input_size=16, hidden_size=32,
    # output_size=2 (fixed in the module), small batch for the demo.
    input_size, hidden_size, output_size = 16, 32, 2

    key = jax.random.PRNGKey(0)
    kx, kw1, kw2, kx2 = jax.random.split(key, 4)
    # setWeights equivalent: W = [W1, W2]
    W1 = jax.random.normal(kw1, (input_size, hidden_size), dtype=jnp.float32)
    W2 = jax.random.normal(kw2, (hidden_size, output_size), dtype=jnp.float32)

    # 1) batch=8: single full-batch block, force the Pallas path so it is exercised.
    x = jax.random.normal(kx, (8, input_size), dtype=jnp.float32)
    out = neural_network_forward(x, W1, W2, force_pallas=True)
    jax.block_until_ready(out)
    ref = jnp.tanh(jnp.tanh(x @ W1) @ W2)
    assert out.shape == (8, output_size)
    assert jnp.allclose(out, ref, atol=1e-5, rtol=1e-5)

    # 2) batch=200: multi-step grid (2 tiles of 104 rows) + small tail pad.
    x2 = jax.random.normal(kx2, (200, input_size), dtype=jnp.float32)
    out2 = neural_network_forward(x2, W1, W2, force_pallas=True)
    jax.block_until_ready(out2)
    ref2 = jnp.tanh(jnp.tanh(x2 @ W1) @ W2)
    assert out2.shape == (200, output_size)
    assert jnp.allclose(out2, ref2, atol=1e-5, rtol=1e-5)

    print("KERNEL_OK")
</pallas_src>

<mosaic_0001>
module attributes {stable_mosaic.version = 11 : i64} {
  func.func @mlp_tanh_kernel(%arg0: i32, %arg1: memref<8x16xf32, #tpu.memory_space<vmem>>, %arg2: memref<16x32xf32, #tpu.memory_space<vmem>>, %arg3: memref<32x2xf32, #tpu.memory_space<vmem>>, %arg4: memref<8x2xf32, #tpu.memory_space<vmem>>) attributes {dimension_semantics = [#tpu.dimension_semantics<parallel>], iteration_bounds = array<i64: 1>, scalar_prefetch = 0 : i64, scratch_operands = 0 : i64, tpu.core_type = #tpu.core_type<tc>, window_params = [{transform_indices = @transform_0, window_bounds = array<i64: 8, 16>}, {pipeline_mode = #tpu.pipeline_mode<synchronous>, transform_indices = @transform_1, window_bounds = array<i64: 16, 32>}, {pipeline_mode = #tpu.pipeline_mode<synchronous>, transform_indices = @transform_2, window_bounds = array<i64: 32, 2>}, {transform_indices = @transform_3, window_bounds = array<i64: 8, 2>}]} {
    %c0 = arith.constant 0 : index
    %c0_0 = arith.constant 0 : index
    %0 = vector.load %arg1[%c0, %c0_0] : memref<8x16xf32, #tpu.memory_space<vmem>>, vector<8x16xf32>
    %c0_1 = arith.constant 0 : index
    %c0_2 = arith.constant 0 : index
    %1 = vector.load %arg2[%c0_1, %c0_2] : memref<16x32xf32, #tpu.memory_space<vmem>>, vector<16x32xf32>
    %cst = arith.constant dense<0.000000e+00> : vector<8x32xf32>
    %2 = tpu.matmul %0, %1, %cst {dimension_numbers = #tpu.dot_dimension_numbers<[1], [0], [0], [1], [0, 0, 1, 1], [], []>} : vector<8x16xf32>, vector<16x32xf32>, vector<8x32xf32> -> vector<8x32xf32>
    %3 = math.tanh %2 : vector<8x32xf32>
    %c0_3 = arith.constant 0 : index
    %c0_4 = arith.constant 0 : index
    %4 = vector.load %arg3[%c0_3, %c0_4] : memref<32x2xf32, #tpu.memory_space<vmem>>, vector<32x2xf32>
    %cst_5 = arith.constant dense<0.000000e+00> : vector<8x2xf32>
    %5 = tpu.matmul %3, %4, %cst_5 {dimension_numbers = #tpu.dot_dimension_numbers<[1], [0], [0], [1], [0, 0, 1, 1], [], []>} : vector<8x32xf32>, vector<32x2xf32>, vector<8x2xf32> -> vector<8x2xf32>
    %6 = math.tanh %5 : vector<8x2xf32>
    %c0_6 = arith.constant 0 : index
    %c0_7 = arith.constant 0 : index
    %7 = vector.load %arg4[%c0_6, %c0_7] : memref<8x2xf32, #tpu.memory_space<vmem>>, vector<8x2xf32>
    tpu.vector_store %arg4[%c0_6, %c0_7], %6 {strides = array<i32>} : memref<8x2xf32, #tpu.memory_space<vmem>>, vector<8x2xf32>,
    return
  }
  func.func @transform_0(%arg0: i32) -> (i32, i32) {
    %c0_i32 = arith.constant 0 : i32
    %c0_i32_0 = arith.constant 0 : i32
    return %arg0, %c0_i32 : i32, i32
  }
  func.func @transform_1(%arg0: i32) -> (i32, i32) {
    %c0_i32 = arith.constant 0 : i32
    %c0_i32_0 = arith.constant 0 : i32
    %c0_i32_1 = arith.constant 0 : i32
    return %c0_i32, %c0_i32_0 : i32, i32
  }
  func.func @transform_2(%arg0: i32) -> (i32, i32) {
    %c0_i32 = arith.constant 0 : i32
    %c0_i32_0 = arith.constant 0 : i32
    %c0_i32_1 = arith.constant 0 : i32
    return %c0_i32, %c0_i32_0 : i32, i32
  }
  func.func @transform_3(%arg0: i32) -> (i32, i32) {
    %c0_i32 = arith.constant 0 : i32
    %c0_i32_0 = arith.constant 0 : i32
    return %arg0, %c0_i32 : i32, i32
  }
}

</mosaic_0001>

<llo_original>
// kernel: tpu_custom_call.1
$region0: #{tpu_custom_call.1}
  #allocation0 [shape = 'u32[]', space=smem, size = 0x4, offset = 0x4, fixed_abs, tag = 'smem constant byte address 0x4 - core index']
  #allocation1 [shape = 'u32[72,128]{1,0:T(1,128)}', space=vmem, size = 0x9000, scoped, tag = 'internal scratch']
  %s0 = inlined_call_operand.vmem [shape: f32[8,16], index: 0, kind: input, shape index: {}]
  %s1 = inlined_call_operand.vmem [shape: f32[16,32], index: 1, kind: input, shape index: {}]
  %s2 = inlined_call_operand.vmem [shape: f32[32,2], index: 2, kind: input, shape index: {}]
  %s3 = inlined_call_operand.vmem [shape: f32[8,2], index: 3, kind: output, shape index: {}]
  %s4 = sld [smem:[#allocation0]]
  $region22: #{tpu_custom_call.1} parent=0
    _
  %s6 = ssub.s32 1, %s4
  %s7 = scalar_select 0, %s6, %s4
  // Predicated region
  $region2: #{tpu_custom_call.1} parent=0 // pred_check
    _
  $region3: #{tpu_custom_call.1} parent=0 // pred_check_branch
    %9 = sbr.rel (0) target = $region5
  $region4: #{tpu_custom_call.1} parent=0 // pred_region
    _
  $region5: #{tpu_custom_call.1} parent=0 // pred_fallthru
    _
  // Predicated region
  $region6: #{tpu_custom_call.1} parent=0 // pred_check
    _
  $region7: #{tpu_custom_call.1} parent=0 // pred_check_branch
    %11 = sbr.rel (0) target = $region9
  $region8: #{tpu_custom_call.1} parent=0 // pred_region
    _
  $region9: #{tpu_custom_call.1} parent=0 // pred_fallthru
    _
  // Predicated region
  $region10: #{tpu_custom_call.1} parent=0 // pred_check
    _
  $region11: #{tpu_custom_call.1} parent=0 // pred_check_branch
    %13 = sbr.rel (0) target = $region13
  $region12: #{tpu_custom_call.1} parent=0 // pred_region
    _
  $region13: #{tpu_custom_call.1} parent=0 // pred_fallthru
    _
  %v14 = vld [vmem:[%s0] sm:$0xff]
  %v15 = vld [vmem:[%s1] sm:$0xff]
  %v16 = vld [vmem:[%s1 + $0x8] sm:$0xff]
  %vm17 = vcmask 130048
  %v19 = vsel %vm17, %v14, 0
  %21 = vmatpush.msra.mxu0 0.0
  %22 = vmatpush.msra.mxu0 0.0
  %23 = vmatpush.msra.mxu0 0.0
  %24 = vmatpush.msra.mxu0 0.0
  %25 = vmatpush.msra.mxu0 0.0
  %26 = vmatpush.msra.mxu0 0.0
  %27 = vmatpush.msra.mxu0 0.0
  %28 = vmatpush.msra.mxu0 0.0
  %29 = vmatpush.msra.mxu0 0.0
  %30 = vmatpush.msra.mxu0 0.0
  %31 = vmatpush.msra.mxu0 0.0
  %32 = vmatpush.msra.mxu0 0.0
  %33 = vmatpush.msra.mxu0 0.0
  %34 = vmatpush.msra.mxu0 0.0
  %35 = vmatpush.msra.mxu0 %v16
  %36 = vmatpush.msra.mxu0 %v15
  %37 = vmatmul.f32.gmra.mxu0 %v19
  %v38 = vpop.f32.mrf.mxu0
  %v39 = vadd.f32 0.0, %v38
  %40 = vdwg.mxu0
  %v41 = vtanh.pop %v39
  %v42 = vld [vmem:[%s2] sm:$0xff]
  %v43 = vld [vmem:[%s2 + $0x8] sm:$0xff]
  %v44 = vld [vmem:[%s2 + $0x10] sm:$0xff]
  %v45 = vld [vmem:[%s2 + $0x18] sm:$0xff]
  %vm46 = vcmask 261120
  %v48 = vsel %vm46, %v41, 0
  %50 = vmatpush.msra.mxu0 0.0
  %51 = vmatpush.msra.mxu0 0.0
  %52 = vmatpush.msra.mxu0 0.0
  %53 = vmatpush.msra.mxu0 0.0
  %54 = vmatpush.msra.mxu0 0.0
  %55 = vmatpush.msra.mxu0 0.0
  %56 = vmatpush.msra.mxu0 0.0
  %57 = vmatpush.msra.mxu0 0.0
  %58 = vmatpush.msra.mxu0 0.0
  %59 = vmatpush.msra.mxu0 0.0
  %60 = vmatpush.msra.mxu0 0.0
  %61 = vmatpush.msra.mxu0 0.0
  %62 = vmatpush.msra.mxu0 %v45
  %63 = vmatpush.msra.mxu0 %v44
  %64 = vmatpush.msra.mxu0 %v43
  %65 = vmatpush.msra.mxu0 %v42
  %66 = vmatmul.f32.gmra.mxu0 %v48
  %v67 = vpop.f32.mrf.mxu0
  %v68 = vadd.f32 0.0, %v67
  %69 = vdwg.mxu0
  %v70 = vtanh.pop %v68
  %vm71 = vcmask 15360
  %72 = vst.msk [vmem:[%s3] sm:$0xff] %vm71, %v70
  // Predicated region
  $region14: #{tpu_custom_call.1} parent=0 // pred_check
    _
  $region15: #{tpu_custom_call.1} parent=0 // pred_check_branch
    %74 = sbr.rel (0) target = $region17
  $region16: #{tpu_custom_call.1} parent=0 // pred_region
    _
  $region17: #{tpu_custom_call.1} parent=0 // pred_fallthru
    _
  // Predicated region
  $region18: #{tpu_custom_call.1} parent=0 // pred_check
    _
  $region19: #{tpu_custom_call.1} parent=0 // pred_check_branch
    %76 = sbr.rel (0) target = $region21
  $region20: #{tpu_custom_call.1} parent=0 // pred_region
    _
  $region21: #{tpu_custom_call.1} parent=0 // pred_fallthru
    _

</llo_original>
